<compile_context>
chip_gen: v7x
topology: tpu7x:2x2x1
jax: 0.10.0
libtpu: 0.0.40
codegen_flags: <defaults>
</compile_context>

<pallas_src>
import functools

import jax
import jax.numpy as jnp
from jax.experimental import pallas as pl
from jax.experimental.pallas import tpu as pltpu

H1, H2, H3, OUT = 256, 128, 32, 2   # layer output widths
_SLAB_W = 256                       # lane width of the packed parameter slab
_W4_ROWS = 128                      # w4 row block padded 32 -> 128 (zero rows)
_BIAS_ROWS = 16                     # bias block padded 4 -> 16 rows (bf16 tile)


def _round_up(v, m):
    return (v + m - 1) // m * m


def init_params(key, input_size):
    """PyTorch nn.Linear-style init: U(-1/sqrt(fan_in), 1/sqrt(fan_in)), f32."""
    dims = [(input_size, H1), (H1, H2), (H2, H3), (H3, OUT)]
    params = {}
    for i, (fan_in, fan_out) in enumerate(dims, start=1):
        key, kw, kb = jax.random.split(key, 3)
        bound = 1.0 / (fan_in ** 0.5)
        params[f"w{i}"] = jax.random.uniform(
            kw, (fan_in, fan_out), jnp.float32, minval=-bound, maxval=bound)
        params[f"b{i}"] = jax.random.uniform(
            kb, (fan_out,), jnp.float32, minval=-bound, maxval=bound)
    return params


def pack_params(params, input_size):
    """Pack w1..w4 and b1..b4 into one bf16 (R, 256) slab.

    Row layout (every region start is a multiple of 16 rows):
        [0,            f_pad)        w1 (zero rows for padded input features)
        [f_pad,        +256)         w2 in cols [0,128), rest zero
        [f_pad+256,    +128)         w3 in cols [0,32),  rest zero
        [f_pad+384,    +128)         w4 in rows [0,32) cols [0,2), rest zero
        [f_pad+512,    +16)          b1,b2,b3,b4 (one row each), rest zero
    """
    f_pad = _round_up(max(input_size, 1), 16)
    rows = f_pad + H1 + H2 + _W4_ROWS + _BIAS_ROWS
    slab = jnp.zeros((rows, _SLAB_W), jnp.float32)
    slab = slab.at[0:input_size, :H1].set(params["w1"])
    r = f_pad
    slab = slab.at[r:r + H1, :H2].set(params["w2"]); r += H1
    slab = slab.at[r:r + H2, :H3].set(params["w3"]); r += H2
    slab = slab.at[r:r + H3, :OUT].set(params["w4"]); r += _W4_ROWS
    slab = slab.at[r + 0, :H1].set(params["b1"])
    slab = slab.at[r + 1, :H2].set(params["b2"])
    slab = slab.at[r + 2, :H3].set(params["b3"])
    slab = slab.at[r + 3, :OUT].set(params["b4"])
    return slab.astype(jnp.bfloat16), f_pad


def mlp_kernel(x_ref, p_ref, o_ref, *, f_pad):
    """One batch tile: fused fc1->relu->fc2->relu->fc3->relu->fc4."""
    f32 = jnp.float32
    bf16 = jnp.bfloat16
    r_w2 = f_pad
    r_w3 = r_w2 + H1
    r_w4 = r_w3 + H2
    r_b = r_w4 + _W4_ROWS

    x = x_ref[...]                                               # (TB, f_pad) bf16

    # fc1 + ReLU   (dropout1 is identity at inference)
    w1 = p_ref[pl.ds(0, f_pad), :]                               # (f_pad, 256)
    b1 = p_ref[pl.ds(r_b + 0, 1), :].astype(f32)                 # (1, 256)
    h = jnp.maximum(jnp.dot(x, w1, preferred_element_type=f32) + b1, 0.0)
    h = h.astype(bf16)

    # fc2 + ReLU   (dropout2 is identity at inference)
    w2 = p_ref[pl.ds(r_w2, H1), pl.ds(0, H2)]                    # (256, 128)
    b2 = p_ref[pl.ds(r_b + 1, 1), pl.ds(0, H2)].astype(f32)      # (1, 128)
    h = jnp.maximum(jnp.dot(h, w2, preferred_element_type=f32) + b2, 0.0)
    h = h.astype(bf16)

    # fc3 + ReLU, computed at a zero-padded lane width of 128 so the MXU operand
    # is full-lane; padded output cols are relu(0 + 0) = 0.
    w3 = p_ref[pl.ds(r_w3, H2), pl.ds(0, 128)]                   # (128, 128)
    b3 = p_ref[pl.ds(r_b + 2, 1), pl.ds(0, 128)].astype(f32)     # (1, 128)
    h = jnp.maximum(jnp.dot(h, w3, preferred_element_type=f32) + b3, 0.0)
    h = h.astype(bf16)                                           # cols 32: are 0

    # fc4 (logits), zero-padded to (128, 128); rows 32: and cols 2: are zero so
    # the first 2 output columns are exactly the unpadded result.
    w4 = p_ref[pl.ds(r_w4, _W4_ROWS), pl.ds(0, 128)]             # (128, 128)
    b4 = p_ref[pl.ds(r_b + 3, 1), pl.ds(0, 128)].astype(f32)     # (1, 128)
    logits = jnp.dot(h, w4, preferred_element_type=f32) + b4     # (TB, 128)
    # TODO(synk): the (TB, 2) store is lane-masked; switch to a lane-dense
    # (TB, 128) output slab only if this store ever shows on the critical path.
    o_ref[...] = logits[:, :OUT].astype(o_ref.dtype)


def dnn_fc0001_forward(x, slab, f_pad, *, block_batch=1024):
    """x: (B, F) f32.  slab/f_pad: from pack_params.  Returns (B, 2) f32 logits."""
    B, F = x.shape

    # Cast to bf16 and pad features to the slab's padded fan-in (padded columns
    # hit zero weight rows, so the math is unchanged).
    xp = x.astype(jnp.bfloat16)
    if F < f_pad:
        xp = jnp.pad(xp, ((0, 0), (0, f_pad - F)))

    # Batch tiling: TB rows per grid step (multiple of 8); pad B up to k*TB.
    TB = min(block_batch, _round_up(B, 8))
    Bp = _round_up(B, TB)
    if Bp != B:
        xp = jnp.pad(xp, ((0, Bp - B), (0, 0)))
    grid = (Bp // TB,)

    out = pl.pallas_call(
        functools.partial(mlp_kernel, f_pad=f_pad),
        out_shape=jax.ShapeDtypeStruct((Bp, OUT), jnp.float32),
        grid=grid,
        in_specs=[
            pl.BlockSpec((TB, f_pad), lambda i: (i, 0)),      # batch tile of x
            pl.BlockSpec(slab.shape, lambda i: (0, 0)),       # params, VMEM-resident
        ],
        out_specs=pl.BlockSpec((TB, OUT), lambda i: (i, 0)),
        compiler_params=pltpu.CompilerParams(
            dimension_semantics=("parallel",)),               # shard batch on v7x TCs
    )(xp, slab)
    return out[:B]


if __name__ == "__main__":
    key = jax.random.PRNGKey(0)
    k_x, k_p = jax.random.split(key)

    input_size = 20
    batch = 13           # deliberately not a multiple of the tile to test padding

    x = jax.random.normal(k_x, (batch, input_size), dtype=jnp.float32)
    params = init_params(k_p, input_size)
    slab, f_pad = pack_params(params, input_size)

    # block_batch=8 keeps the example small while exercising a multi-step grid.
    out = dnn_fc0001_forward(x, slab, f_pad, block_batch=8)
    out = jax.block_until_ready(out)
    assert out.shape == (batch, OUT)

    # Plain-JAX reference mirroring the kernel's dtype chain
    # (bf16 operands, f32 accumulation, dropout = identity in eval mode).
    bf = jnp.bfloat16
    def lin(h, w, b):
        return (jnp.dot(h, w.astype(bf), preferred_element_type=jnp.float32)
                + b.astype(bf).astype(jnp.float32))
    h = jnp.maximum(lin(x.astype(bf), params["w1"], params["b1"]), 0.0).astype(bf)
    h = jnp.maximum(lin(h, params["w2"], params["b2"]), 0.0).astype(bf)
    h = jnp.maximum(lin(h, params["w3"], params["b3"]), 0.0).astype(bf)
    ref = lin(h, params["w4"], params["b4"])

    assert jnp.allclose(out, ref, atol=1e-2, rtol=1e-2), (out, ref)
    print("KERNEL_OK")
</pallas_src>

<mosaic_0001>
module attributes {stable_mosaic.version = 11 : i64} {
  func.func @mlp_kernel(%arg0: i32, %arg1: memref<8x32xbf16, #tpu.memory_space<vmem>>, %arg2: memref<560x256xbf16, #tpu.memory_space<vmem>>, %arg3: memref<8x2xf32, #tpu.memory_space<vmem>>) attributes {dimension_semantics = [#tpu.dimension_semantics<parallel>], iteration_bounds = array<i64: 2>, scalar_prefetch = 0 : i64, scratch_operands = 0 : i64, tpu.core_type = #tpu.core_type<tc>, window_params = [{transform_indices = @transform_0, window_bounds = array<i64: 8, 32>}, {pipeline_mode = #tpu.pipeline_mode<synchronous>, transform_indices = @transform_1, window_bounds = array<i64: 560, 256>}, {transform_indices = @transform_2, window_bounds = array<i64: 8, 2>}]} {
    %c0 = arith.constant 0 : index
    %c0_0 = arith.constant 0 : index
    %0 = vector.load %arg1[%c0, %c0_0] : memref<8x32xbf16, #tpu.memory_space<vmem>>, vector<8x32xbf16>
    %c0_1 = arith.constant 0 : index
    %c0_2 = arith.constant 0 : index
    %1 = vector.load %arg2[%c0_1, %c0_2] : memref<560x256xbf16, #tpu.memory_space<vmem>>, vector<32x256xbf16>
    %c544 = arith.constant 544 : index
    %c0_3 = arith.constant 0 : index
    %2 = vector.load %arg2[%c544, %c0_3] : memref<560x256xbf16, #tpu.memory_space<vmem>>, vector<1x256xbf16>
    %3 = arith.extf %2 : vector<1x256xbf16> to vector<1x256xf32>
    %cst = arith.constant dense<0.000000e+00> : vector<8x256xf32>
    %4 = tpu.matmul %0, %1, %cst {dimension_numbers = #tpu.dot_dimension_numbers<[1], [0], [0], [1], [0, 0, 1, 1], [], []>} : vector<8x32xbf16>, vector<32x256xbf16>, vector<8x256xf32> -> vector<8x256xf32>
    %5 = vector.broadcast %3 : vector<1x256xf32> to vector<8x256xf32>
    %6 = arith.addf %4, %5 : vector<8x256xf32>
    %cst_4 = arith.constant 0.000000e+00 : f32
    %7 = vector.broadcast %cst_4 : f32 to vector<8x256xf32>
    %8 = arith.maximumf %6, %7 : vector<8x256xf32>
    %9 = arith.truncf %8 : vector<8x256xf32> to vector<8x256xbf16>
    %c32 = arith.constant 32 : index
    %c0_5 = arith.constant 0 : index
    %10 = vector.load %arg2[%c32, %c0_5] : memref<560x256xbf16, #tpu.memory_space<vmem>>, vector<256x128xbf16>
    %c545 = arith.constant 545 : index
    %c0_6 = arith.constant 0 : index
    %11 = vector.load %arg2[%c545, %c0_6] : memref<560x256xbf16, #tpu.memory_space<vmem>>, vector<1x128xbf16>
    %12 = arith.extf %11 : vector<1x128xbf16> to vector<1x128xf32>
    %cst_7 = arith.constant dense<0.000000e+00> : vector<8x128xf32>
    %13 = tpu.matmul %9, %10, %cst_7 {dimension_numbers = #tpu.dot_dimension_numbers<[1], [0], [0], [1], [0, 0, 1, 1], [], []>} : vector<8x256xbf16>, vector<256x128xbf16>, vector<8x128xf32> -> vector<8x128xf32>
    %14 = vector.broadcast %12 : vector<1x128xf32> to vector<8x128xf32>
    %15 = arith.addf %13, %14 : vector<8x128xf32>
    %cst_8 = arith.constant 0.000000e+00 : f32
    %16 = vector.broadcast %cst_8 : f32 to vector<8x128xf32>
    %17 = arith.maximumf %15, %16 : vector<8x128xf32>
    %18 = arith.truncf %17 : vector<8x128xf32> to vector<8x128xbf16>
    %c288 = arith.constant 288 : index
    %c0_9 = arith.constant 0 : index
    %19 = vector.load %arg2[%c288, %c0_9] : memref<560x256xbf16, #tpu.memory_space<vmem>>, vector<128x128xbf16>
    %c546 = arith.constant 546 : index
    %c0_10 = arith.constant 0 : index
    %20 = vector.load %arg2[%c546, %c0_10] : memref<560x256xbf16, #tpu.memory_space<vmem>>, vector<1x128xbf16>
    %21 = arith.extf %20 : vector<1x128xbf16> to vector<1x128xf32>
    %cst_11 = arith.constant dense<0.000000e+00> : vector<8x128xf32>
    %22 = tpu.matmul %18, %19, %cst_11 {dimension_numbers = #tpu.dot_dimension_numbers<[1], [0], [0], [1], [0, 0, 1, 1], [], []>} : vector<8x128xbf16>, vector<128x128xbf16>, vector<8x128xf32> -> vector<8x128xf32>
    %23 = vector.broadcast %21 : vector<1x128xf32> to vector<8x128xf32>
    %24 = arith.addf %22, %23 : vector<8x128xf32>
    %cst_12 = arith.constant 0.000000e+00 : f32
    %25 = vector.broadcast %cst_12 : f32 to vector<8x128xf32>
    %26 = arith.maximumf %24, %25 : vector<8x128xf32>
    %27 = arith.truncf %26 : vector<8x128xf32> to vector<8x128xbf16>
    %c416 = arith.constant 416 : index
    %c0_13 = arith.constant 0 : index
    %28 = vector.load %arg2[%c416, %c0_13] : memref<560x256xbf16, #tpu.memory_space<vmem>>, vector<128x128xbf16>
    %c547 = arith.constant 547 : index
    %c0_14 = arith.constant 0 : index
    %29 = vector.load %arg2[%c547, %c0_14] : memref<560x256xbf16, #tpu.memory_space<vmem>>, vector<1x128xbf16>
    %30 = arith.extf %29 : vector<1x128xbf16> to vector<1x128xf32>
    %cst_15 = arith.constant dense<0.000000e+00> : vector<8x128xf32>
    %31 = tpu.matmul %27, %28, %cst_15 {dimension_numbers = #tpu.dot_dimension_numbers<[1], [0], [0], [1], [0, 0, 1, 1], [], []>} : vector<8x128xbf16>, vector<128x128xbf16>, vector<8x128xf32> -> vector<8x128xf32>
    %32 = vector.broadcast %30 : vector<1x128xf32> to vector<8x128xf32>
    %33 = arith.addf %31, %32 : vector<8x128xf32>
    %34 = vector.extract_strided_slice %33 {offsets = [0, 0], sizes = [8, 2], strides = [1, 1]} : vector<8x128xf32> to vector<8x2xf32>
    %c0_16 = arith.constant 0 : index
    %c0_17 = arith.constant 0 : index
    %35 = vector.load %arg3[%c0_16, %c0_17] : memref<8x2xf32, #tpu.memory_space<vmem>>, vector<8x2xf32>
    tpu.vector_store %arg3[%c0_16, %c0_17], %34 {strides = array<i32>} : memref<8x2xf32, #tpu.memory_space<vmem>>, vector<8x2xf32>,
    return
  }
  func.func @transform_0(%arg0: i32) -> (i32, i32) {
    %c0_i32 = arith.constant 0 : i32
    %c0_i32_0 = arith.constant 0 : i32
    return %arg0, %c0_i32 : i32, i32
  }
  func.func @transform_1(%arg0: i32) -> (i32, i32) {
    %c0_i32 = arith.constant 0 : i32
    %c0_i32_0 = arith.constant 0 : i32
    %c0_i32_1 = arith.constant 0 : i32
    return %c0_i32, %c0_i32_0 : i32, i32
  }
  func.func @transform_2(%arg0: i32) -> (i32, i32) {
    %c0_i32 = arith.constant 0 : i32
    %c0_i32_0 = arith.constant 0 : i32
    return %arg0, %c0_i32 : i32, i32
  }
}

</mosaic_0001>

<llo_original>
// kernel: tpu_custom_call.1
$region0: #{tpu_custom_call.1}
  #allocation0 [shape = 'u32[]', space=smem, size = 0x4, offset = 0x4, fixed_abs, tag = 'smem constant byte address 0x4 - core index']
  #allocation1 [shape = 'u32[144,128]{1,0:T(1,128)}', space=vmem, size = 0x12000, scoped, tag = 'internal scratch']
  %s0 = inlined_call_operand.hbm [shape: bf16[16,32], index: 0, kind: input, shape index: {}]
  %s1 = inlined_call_operand.hbm [shape: bf16[560,256], index: 1, kind: input, shape index: {}]
  %s2 = inlined_call_operand.vmem [shape: f32[16,2], index: 2, kind: output, shape index: {}]
  %s3 = sld [smem:[#allocation0]]
  $region49: #{tpu_custom_call.1} parent=0
    _
  %s5 = ssub.s32 1, %s3
  %s6 = scalar_select 0, %s5, %s3
  $region1: #{tpu_custom_call.1} parent=0
    #allocation2 [shape = 'u8[4096]{0}', space=vmem, size = 0x1000, scoped, tag = 'input window, operand 0']
    #allocation3 [shape = 's32[2]{0}', space=sflag, size = 0x8, scoped, tag = 'scoped memory for tpu_custom_call.1']
    #allocation4 [shape = 'u8[286720]{0}', space=vmem, size = 0x46000, scoped, tag = 'input window, operand 1, single buffered']
    #allocation5 [shape = 's32[1]{0}', space=sflag, size = 0x4, scoped, tag = 'scoped memory for tpu_custom_call.1']
    %7 = vsyncpa [#allocation3], 0
    %s8 = scalar_lea.sflag [#allocation3], 1
    %9 = vsyncpa %s8, 0
    %10 = vsyncpa [#allocation5], 0
    loop: start=0, step=1, limit=4
    $region2: #{tpu_custom_call.1} parent=1 // loop_pre_header
      _
    $region3: #{tpu_custom_call.1} parent=1 // loop_header
      %s12 = sphi 0, %s16
      %p13 = scmp.ge.s32.totalorder %s12, 4
      %s22 = sphi 0, %s24
      %s25 = sphi 0, %s22
      %s26 = sphi 0, %s25
      %s42 = sphi 0, %s26
      %s46 = sphi 0, %s46
      %s48 = sphi 0, %s46
      %s49 = sphi 0, %s48
      %s63 = sphi 0, %s49
      %s69 = sphi 0, %s71
      %s72 = sphi 0, %s69
      %s73 = sphi 0, %s72
      %s89 = sphi 0, %s73
    $region4: #{tpu_custom_call.1} parent=1 // loop_header_branch
      %15 = sbr.rel (%p13) target = $region8
    $region5: #{tpu_custom_call.1} parent=1 // loop_body
      %s17 = ssub.s32 %s12, 1
      %s18 = ssub.s32 %s12, 2
      %s19 = sadd.s32 %s12, 1
      %s20 = ssub.s32 %s12, %s19
      %p21 = scmp.eq.s32.totalorder %s20, 0
      %s23 = sadd.s32 %s22, 1
      %s24 = scalar_select %p21, %s22, %s23
      %p27 = pneg %p21
      %p28 = scmp.eq.s32.totalorder %s12, 1
      %p29 = por %p27, %p28
      %p30 = scmp.ne.s32.totalorder %s22, %s25
      %p31 = scmp.eq.s32.totalorder %s12, 0
      %p32 = por %p30, %p31
      %p33 = scmp.ne.s32.totalorder %s22, %s25
      %p34 = scmp.eq.s32.totalorder %s17, 1
      %p35 = por %p33, %p34
      %p36 = scmp.ne.s32.totalorder %s25, %s26
      %p37 = scmp.eq.s32.totalorder %s17, 0
      %p38 = por %p36, %p37
      %p39 = scmp.ne.s32.totalorder %s25, %s26
      %p40 = scmp.eq.s32.totalorder %s18, 1
      %p41 = por %p39, %p40
      %p43 = scmp.ne.s32.totalorder %s26, %s42
      %p44 = scmp.eq.s32.totalorder %s18, 0
      %p45 = por %p43, %p44
      %s47 = sadd.s32 %s46, 1
      %p50 = scmp.eq.s32.totalorder %s12, 1
      %p51 = scmp.ne.s32.totalorder %s46, %s48
      %p52 = scmp.eq.s32.totalorder %s12, 0
      %p53 = por %p51, %p52
      %p54 = scmp.ne.s32.totalorder %s46, %s48
      %p55 = scmp.eq.s32.totalorder %s17, 1
      %p56 = por %p54, %p55
      %p57 = scmp.ne.s32.totalorder %s48, %s49
      %p58 = scmp.eq.s32.totalorder %s17, 0
      %p59 = por %p57, %p58
      %p60 = scmp.ne.s32.totalorder %s48, %s49
      %p61 = scmp.eq.s32.totalorder %s18, 1
      %p62 = por %p60, %p61
      %p64 = scmp.ne.s32.totalorder %s49, %s63
      %p65 = scmp.eq.s32.totalorder %s18, 0
      %p66 = por %p64, %p65
      %s67 = ssub.s32 %s12, %s19
      %p68 = scmp.eq.s32.totalorder %s67, 0
      %s70 = sadd.s32 %s69, 1
      %s71 = scalar_select %p68, %s69, %s70
      %p74 = pneg %p68
      %p75 = scmp.eq.s32.totalorder %s12, 1
      %p76 = por %p74, %p75
      %p77 = scmp.ne.s32.totalorder %s69, %s72
      %p78 = scmp.eq.s32.totalorder %s12, 0
      %p79 = por %p77, %p78
      %p80 = scmp.ne.s32.totalorder %s69, %s72
      %p81 = scmp.eq.s32.totalorder %s17, 1
      %p82 = por %p80, %p81
      %p83 = scmp.ne.s32.totalorder %s72, %s73
      %p84 = scmp.eq.s32.totalorder %s17, 0
      %p85 = por %p83, %p84
      %p86 = scmp.ne.s32.totalorder %s72, %s73
      %p87 = scmp.eq.s32.totalorder %s18, 1
      %p88 = por %p86, %p87
      %p90 = scmp.ne.s32.totalorder %s73, %s89
      %p91 = scmp.eq.s32.totalorder %s18, 0
      %p92 = por %p90, %p91
      %p93 = scmp.le.s32.totalorder 1, %s12
      %p94 = scmp.lt.s32.totalorder %s12, 3
      %p95 = pnand %p93, %p94
      %p96 = pneg %p95
      // Predicated region
      $region9: #{tpu_custom_call.1} parent=5 // pred_check
        _
      $region10: #{tpu_custom_call.1} parent=5 // pred_check_branch
        %98 = sbr.rel (%p95) target = $region12
      $region11: #{tpu_custom_call.1} parent=5 // pred_region
        %s99 = ssub.s32 %s12, 1
        // Predicated region
        $region13: #{tpu_custom_call.1} parent=11 // pred_check
          %p100 = pneg %p59
        $region14: #{tpu_custom_call.1} parent=11 // pred_check_branch
          %102 = sbr.rel (%p100) target = $region16
        $region15: #{tpu_custom_call.1} parent=11 // pred_region
          %s104 = ssub.s32 8960, 8960
          %105 = vsyncadd [#allocation5], %s104
          %s106 = sshll.u32 [#allocation4], 4
          %s107 = int_to_ptr.vmem [resolvable:$true] %s106
          %112 = dma.hbm_to_vmem [thread:$0]  %s1, 8960, %s107, [#allocation5], 128, 128, 8
        $region16: #{tpu_custom_call.1} parent=11 // pred_fallthru
          _
      $region12: #{tpu_custom_call.1} parent=5 // pred_fallthru
        _
      %p113 = scmp.lt.s32.totalorder %s12, 2
      // Predicated region
      $region17: #{tpu_custom_call.1} parent=5 // pred_check
        %p114 = pneg %p113
      $region18: #{tpu_custom_call.1} parent=5 // pred_check_branch
        %116 = sbr.rel (%p114) target = $region20
      $region19: #{tpu_custom_call.1} parent=5 // pred_region
        // Predicated region
        $region21: #{tpu_custom_call.1} parent=19 // pred_check
          %p117 = pneg %p32
        $region22: #{tpu_custom_call.1} parent=19 // pred_check_branch
          %119 = sbr.rel (%p117) target = $region24
        $region23: #{tpu_custom_call.1} parent=19 // pred_region
          %s120 = sand.u32 %s22, 1
          %s121 = scalar_lea.sflag [#allocation3], %s120
          %s122 = sand.u32 %s22, 1
          %s123 = smul.addr %s122, 4
          %s124 = scalar_lea.vmem [#allocation2], %s123
          %s126 = ssub.s32 64, 64
          %127 = vsyncadd %s121, %s126
          %s128 = smul.addr %s12, 64
          %s129 = scalar_lea.hbm %s0, %s128
          %s131 = sshll.u32 %s124, 4
          %s132 = int_to_ptr.vmem [resolvable:$true] %s131
          %134 = dma.hbm_to_vmem [thread:$0]  %s129, 64, %s132, %s121
        $region24: #{tpu_custom_call.1} parent=19 // pred_fallthru
          _
      $region20: #{tpu_custom_call.1} parent=5 // pred_fallthru
        _
      %p135 = scmp.le.s32.totalorder 1, %s12
      %p136 = scmp.lt.s32.totalorder %s12, 3
      %p137 = pnand %p135, %p136
      %p138 = pneg %p137
      // Predicated region
      $region25: #{tpu_custom_call.1} parent=5 // pred_check
        _
      $region26: #{tpu_custom_call.1} parent=5 // pred_check_branch
        %140 = sbr.rel (%p137) target = $region28
      $region27: #{tpu_custom_call.1} parent=5 // pred_region
        %s141 = ssub.s32 %s12, 1
        %s142 = sand.u32 %s25, 1
        %s143 = scalar_lea.sflag [#allocation3], %s142
        %s144 = sand.u32 %s25, 1
        %s145 = smul.addr %s144, 4
        %s146 = scalar_lea.vmem [#allocation2], %s145
        // Predicated region
        $region29: #{tpu_custom_call.1} parent=27 // pred_check
          %p147 = pneg %p38
        $region30: #{tpu_custom_call.1} parent=27 // pred_check_branch
          %149 = sbr.rel (%p147) target = $region32
        $region31: #{tpu_custom_call.1} parent=27 // pred_region
          %150 = dma.done %s143, 64
        $region32: #{tpu_custom_call.1} parent=27 // pred_fallthru
          _
        // Predicated region
        $region33: #{tpu_custom_call.1} parent=27 // pred_check
          %p151 = pneg %p59
        $region34: #{tpu_custom_call.1} parent=27 // pred_check_branch
          %153 = sbr.rel (%p151) target = $region36
        $region35: #{tpu_custom_call.1} parent=27 // pred_region
          %154 = dma.done [#allocation5], 8960
        $region36: #{tpu_custom_call.1} parent=27 // pred_fallthru
          _
        %s155 = sand.u32 %s25, 1
        %s156 = scalar_lea.sflag [#allocation3], %s155
        %s157 = sand.u32 %s25, 1
        %s158 = smul.addr %s157, 4
        %s159 = scalar_lea.vmem [#allocation2], %s158
        %p160 = pneg %p38
        %p161 = pneg %p35
        %p162 = pneg %p59
        %p163 = pneg %p56
        %p164 = pneg %p85
        %p165 = pneg %p82
        %p166 = scmp.lt.s32.totalorder %s17, 1
        %s167 = scalar_select %p166, %s17, 1
        %s168 = smul.addr %s167, 8
        %s169 = scalar_lea.vmem %s2, %s168
        %p170 = scmp.lt.s32.totalorder %s17, 1
        %s171 = scalar_select %p170, %s17, 1
        %s172 = smul.addr %s171, 8
        %s173 = scalar_lea.vmem %s2, %s172
        %v175 = vld [vmem:[%s146] sm:$0xf]
        %v176 = vld [vmem:[#allocation4] sm:$0xff]
        %v177 = vld [vmem:[#allocation4 + $0x8] sm:$0xff]
        %v178 = vld [vmem:[#allocation4 + $0x10] sm:$0xff]
        %v179 = vld [vmem:[#allocation4 + $0x18] sm:$0xff]
        %v180 = vld [vmem:[#allocation4 + $0x220] sm:$0x11]
        %v181 = vunpack.c.l.bf16 %v180
        %v182 = vunpack.c.h.bf16 %v180
        %v183 = vlaneseq
        %v184 = vshrl.u32 %v183, 7
        %v185 = vsub.s32 0, %v184
        %v186 = vrot.slane %v181, %v185
        %v187 = vlaneseq
        %v188 = vshrl.u32 %v187, 7
        %v189 = vsub.s32 0, %v188
        %v190 = vrot.slane %v182, %v189
        %v195 = vunpack.c.l.b16 %v176
        %v196 = vunpack.c.h.b16 %v176
        %v197 = vunpack.c.l.b16 %v177
        %v198 = vunpack.c.h.b16 %v177
        %v199 = vunpack.c.l.b16 %v178
        %v200 = vunpack.c.h.b16 %v178
        %v201 = vunpack.c.l.b16 %v179
        %v202 = vunpack.c.h.b16 %v179
        %v203 = vpack.c.b16 %v197, %v195
        %v204 = vpack.c.b16 %v198, %v196
        %v205 = vpack.c.b16 %v201, %v199
        %v206 = vpack.c.b16 %v202, %v200
        %vm211 = vcmask 261120
        %v213 = vsel %vm211, %v175, 0
        %215 = vmatprep.subr.bf16.mxu0 %v204
        %216 = vmatpush1.bf16.msra.mxu0 %v203
        %217 = vmatprep.subr.bf16.mxu0 %v206
        %218 = vmatpush1.bf16.msra.mxu0 %v205
        %219 = vmatprep.subr.bf16.mxu0 0
        %220 = vmatpush1.bf16.msra.mxu0 0
        %221 = vmatprep.subr.bf16.mxu0 0
        %222 = vmatpush1.bf16.msra.mxu0 0
        %223 = vmatprep.subr.bf16.mxu0 0
        %224 = vmatpush1.bf16.msra.mxu0 0
        %225 = vmatprep.subr.bf16.mxu0 0
        %226 = vmatpush1.bf16.msra.mxu0 0
        %227 = vmatprep.subr.bf16.mxu0 0
        %228 = vmatpush1.bf16.msra.mxu0 0
        %229 = vmatprep.subr.bf16.mxu0 0
        %230 = vmatpush1.bf16.msra.mxu0 0
        %231 = vmatprep.subr.bf16.mxu0 0
        %232 = vmatpush1.bf16.msra.mxu0 0
        %233 = vmatprep.subr.bf16.mxu0 0
        %234 = vmatpush1.bf16.msra.mxu0 0
        %235 = vmatprep.subr.bf16.mxu0 0
        %236 = vmatpush1.bf16.msra.mxu0 0
        %237 = vmatprep.subr.bf16.mxu0 0
        %238 = vmatpush1.bf16.msra.mxu0 0
        %239 = vmatprep.subr.bf16.mxu0 0
        %240 = vmatpush1.bf16.msra.mxu0 0
        %241 = vmatprep.subr.bf16.mxu0 0
        %242 = vmatpush1.bf16.msra.mxu0 0
        %243 = vmatprep.subr.bf16.mxu0 0
        %244 = vmatpush1.bf16.msra.mxu0 0
        %245 = vmatprep.subr.bf16.mxu0 0
        %246 = vmatpush1.bf16.msra.mxu0 0
        %247 = vmatprep.mubr.bf16.mxu0 0
        %248 = vmatmul.mubr.bf16.gmra.mrb[0].mxu0 %v213
        %v249 = vpop.f32.mrb[0].mxu0
        %v250 = vadd.f32 %v186, %v249
        %v251 = vpop.f32.mrb[0].mxu0
        %v252 = vadd.f32 %v190, %v251
        %v253 = vpop.f32.mrb[0].mxu0
        %v254 = vpop.f32.mrb[0].mxu0
        %255 = vdwg.mxu0
        %v256 = vmax.f32 %v250, 0.0
        %v257 = vmax.f32 %v252, 0.0
        %v258 = vpack.c.bf16 %v256, %v256
        %v259 = vpack.c.bf16 %v257, %v257
        %v260 = vld [vmem:[#allocation4 + $0x20] sm:$0xf]
        %v261 = vld [vmem:[#allocation4 + $0x28] sm:$0xf]
        %v262 = vld [vmem:[#allocation4 + $0x30] sm:$0xf]
        %v263 = vld [vmem:[#allocation4 + $0x38] sm:$0xf]
        %v264 = vld [vmem:[#allocation4 + $0x40] sm:$0xf]
        %v265 = vld [vmem:[#allocation4 + $0x48] sm:$0xf]
        %v266 = vld [vmem:[#allocation4 + $0x50] sm:$0xf]
        %v267 = vld [vmem:[#allocation4 + $0x58] sm:$0xf]
        %v268 = vld [vmem:[#allocation4 + $0x60] sm:$0xf]
        %v269 = vld [vmem:[#allocation4 + $0x68] sm:$0xf]
        %v270 = vld [vmem:[#allocation4 + $0x70] sm:$0xf]
        %v271 = vld [vmem:[#allocation4 + $0x78] sm:$0xf]
        %v272 = vld [vmem:[#allocation4 + $0x80] sm:$0xf]
        %v273 = vld [vmem:[#allocation4 + $0x88] sm:$0xf]
        %v274 = vld [vmem:[#allocation4 + $0x90] sm:$0xf]
        %v275 = vld [vmem:[#allocation4 + $0x98] sm:$0xf]
        %v276 = vld [vmem:[#allocation4 + $0xa0] sm:$0xf]
        %v277 = vld [vmem:[#allocation4 + $0xa8] sm:$0xf]
        %v278 = vld [vmem:[#allocation4 + $0xb0] sm:$0xf]
        %v279 = vld [vmem:[#allocation4 + $0xb8] sm:$0xf]
        %v280 = vld [vmem:[#allocation4 + $0xc0] sm:$0xf]
        %v281 = vld [vmem:[#allocation4 + $0xc8] sm:$0xf]
        %v282 = vld [vmem:[#allocation4 + $0xd0] sm:$0xf]
        %v283 = vld [vmem:[#allocation4 + $0xd8] sm:$0xf]
        %v284 = vld [vmem:[#allocation4 + $0xe0] sm:$0xf]
        %v285 = vld [vmem:[#allocation4 + $0xe8] sm:$0xf]
        %v286 = vld [vmem:[#allocation4 + $0xf0] sm:$0xf]
        %v287 = vld [vmem:[#allocation4 + $0xf8] sm:$0xf]
        %v288 = vld [vmem:[#allocation4 + $0x100] sm:$0xf]
        %v289 = vld [vmem:[#allocation4 + $0x108] sm:$0xf]
        %v290 = vld [vmem:[#allocation4 + $0x110] sm:$0xf]
        %v291 = vld [vmem:[#allocation4 + $0x118] sm:$0xf]
        %v292 = vld [vmem:[#allocation4 + $0x220] sm:$0x1]
        %v293 = vunpack.c.l.bf16 %v292
        %v294 = vlaneseq
        %v295 = vshrl.u32 %v294, 7
        %v296 = vsub.s32 1, %v295
        %v297 = vrot.slane %v293, %v296
        %v330 = vunpack.c.l.b16 %v260
        %v331 = vunpack.c.l.b16 %v261
        %v332 = vunpack.c.l.b16 %v262
        %v333 = vunpack.c.l.b16 %v263
        %v334 = vunpack.c.l.b16 %v264
        %v335 = vunpack.c.l.b16 %v265
        %v336 = vunpack.c.l.b16 %v266
        %v337 = vunpack.c.l.b16 %v267
        %v338 = vunpack.c.l.b16 %v268
        %v339 = vunpack.c.l.b16 %v269
        %v340 = vunpack.c.l.b16 %v270
        %v341 = vunpack.c.l.b16 %v271
        %v342 = vunpack.c.l.b16 %v272
        %v343 = vunpack.c.l.b16 %v273
        %v344 = vunpack.c.l.b16 %v274
        %v345 = vunpack.c.l.b16 %v275
        %v346 = vunpack.c.l.b16 %v276
        %v347 = vunpack.c.l.b16 %v277
        %v348 = vunpack.c.l.b16 %v278
        %v349 = vunpack.c.l.b16 %v279
        %v350 = vunpack.c.l.b16 %v280
        %v351 = vunpack.c.l.b16 %v281
        %v352 = vunpack.c.l.b16 %v282
        %v353 = vunpack.c.l.b16 %v283
        %v354 = vunpack.c.l.b16 %v284
        %v355 = vunpack.c.l.b16 %v285
        %v356 = vunpack.c.l.b16 %v286
        %v357 = vunpack.c.l.b16 %v287
        %v358 = vunpack.c.l.b16 %v288
        %v359 = vunpack.c.l.b16 %v289
        %v360 = vunpack.c.l.b16 %v290
        %v361 = vunpack.c.l.b16 %v291
        %v362 = vpack.c.b16 %v331, %v330
        %v363 = vpack.c.b16 %v333, %v332
        %v364 = vpack.c.b16 %v335, %v334
        %v365 = vpack.c.b16 %v337, %v336
        %v366 = vpack.c.b16 %v339, %v338
        %v367 = vpack.c.b16 %v341, %v340
        %v368 = vpack.c.b16 %v343, %v342
        %v369 = vpack.c.b16 %v345, %v344
        %v370 = vpack.c.b16 %v347, %v346
        %v371 = vpack.c.b16 %v349, %v348
        %v372 = vpack.c.b16 %v351, %v350
        %v373 = vpack.c.b16 %v353, %v352
        %v374 = vpack.c.b16 %v355, %v354
        %v375 = vpack.c.b16 %v357, %v356
        %v376 = vpack.c.b16 %v359, %v358
        %v377 = vpack.c.b16 %v361, %v360
        %394 = vmatprep.subr.bf16.mxu0 0
        %395 = vmatpush1.bf16.msra.mxu0 %v362
        %396 = vmatprep.subr.bf16.mxu0 0
        %397 = vmatpush1.bf16.msra.mxu0 %v363
        %398 = vmatprep.subr.bf16.mxu0 0
        %399 = vmatpush1.bf16.msra.mxu0 %v364
        %400 = vmatprep.subr.bf16.mxu0 0
        %401 = vmatpush1.bf16.msra.mxu0 %v365
        %402 = vmatprep.subr.bf16.mxu0 0
        %403 = vmatpush1.bf16.msra.mxu0 %v366
        %404 = vmatprep.subr.bf16.mxu0 0
        %405 = vmatpush1.bf16.msra.mxu0 %v367
        %406 = vmatprep.subr.bf16.mxu0 0
        %407 = vmatpush1.bf16.msra.mxu0 %v368
        %408 = vmatprep.subr.bf16.mxu0 0
        %409 = vmatpush1.bf16.msra.mxu0 %v369
        %410 = vmatprep.subr.bf16.mxu0 0
        %411 = vmatpush1.bf16.msra.mxu0 %v370
        %412 = vmatprep.subr.bf16.mxu0 0
        %413 = vmatpush1.bf16.msra.mxu0 %v371
        %414 = vmatprep.subr.bf16.mxu0 0
        %415 = vmatpush1.bf16.msra.mxu0 %v372
        %416 = vmatprep.subr.bf16.mxu0 0
        %417 = vmatpush1.bf16.msra.mxu0 %v373
        %418 = vmatprep.subr.bf16.mxu0 0
        %419 = vmatpush1.bf16.msra.mxu0 %v374
        %420 = vmatprep.subr.bf16.mxu0 0
        %421 = vmatpush1.bf16.msra.mxu0 %v375
        %422 = vmatprep.subr.bf16.mxu0 0
        %423 = vmatpush1.bf16.msra.mxu0 %v376
        %424 = vmatprep.subr.bf16.mxu0 0
        %425 = vmatpush1.bf16.msra.mxu0 %v377
        %426 = vmatprep.mubr.bf16.mxu0 %v259
        %427 = vmatmul.mubr.bf16.gmra.mrb[0].mxu0 %v258
        %v428 = vpop.f32.mrb[0].mxu0
        %v429 = vadd.f32 %v297, %v428
        %v430 = vpop.f32.mrb[0].mxu0
        %v431 = vpop.f32.mrb[0].mxu0
        %v432 = vpop.f32.mrb[0].mxu0
        %433 = vdwg.mxu0
        %v434 = vmax.f32 %v429, 0.0
        %v435 = vpack.c.bf16 %v434, %v434
        %v436 = vld [vmem:[#allocation4 + $0x120] sm:$0xf]
        %v437 = vld [vmem:[#allocation4 + $0x128] sm:$0xf]
        %v438 = vld [vmem:[#allocation4 + $0x130] sm:$0xf]
        %v439 = vld [vmem:[#allocation4 + $0x138] sm:$0xf]
        %v440 = vld [vmem:[#allocation4 + $0x140] sm:$0xf]
        %v441 = vld [vmem:[#allocation4 + $0x148] sm:$0xf]
        %v442 = vld [vmem:[#allocation4 + $0x150] sm:$0xf]
        %v443 = vld [vmem:[#allocation4 + $0x158] sm:$0xf]
        %v444 = vld [vmem:[#allocation4 + $0x160] sm:$0xf]
        %v445 = vld [vmem:[#allocation4 + $0x168] sm:$0xf]
        %v446 = vld [vmem:[#allocation4 + $0x170] sm:$0xf]
        %v447 = vld [vmem:[#allocation4 + $0x178] sm:$0xf]
        %v448 = vld [vmem:[#allocation4 + $0x180] sm:$0xf]
        %v449 = vld [vmem:[#allocation4 + $0x188] sm:$0xf]
        %v450 = vld [vmem:[#allocation4 + $0x190] sm:$0xf]
        %v451 = vld [vmem:[#allocation4 + $0x198] sm:$0xf]
        %v452 = vld [vmem:[#allocation4 + $0x220] sm:$0x2]
        %v453 = vunpack.c.l.bf16 %v452
        %v454 = vlaneseq
        %v455 = vshrl.u32 %v454, 7
        %v456 = vsub.s32 2, %v455
        %v457 = vrot.slane %v453, %v456
        %v474 = vunpack.c.l.b16 %v436
        %v475 = vunpack.c.l.b16 %v437
        %v476 = vunpack.c.l.b16 %v438
        %v477 = vunpack.c.l.b16 %v439
        %v478 = vunpack.c.l.b16 %v440
        %v479 = vunpack.c.l.b16 %v441
        %v480 = vunpack.c.l.b16 %v442
        %v481 = vunpack.c.l.b16 %v443
        %v482 = vunpack.c.l.b16 %v444
        %v483 = vunpack.c.l.b16 %v445
        %v484 = vunpack.c.l.b16 %v446
        %v485 = vunpack.c.l.b16 %v447
        %v486 = vunpack.c.l.b16 %v448
        %v487 = vunpack.c.l.b16 %v449
        %v488 = vunpack.c.l.b16 %v450
        %v489 = vunpack.c.l.b16 %v451
        %v490 = vpack.c.b16 %v475, %v474
        %v491 = vpack.c.b16 %v477, %v476
        %v492 = vpack.c.b16 %v479, %v478
        %v493 = vpack.c.b16 %v481, %v480
        %v494 = vpack.c.b16 %v483, %v482
        %v495 = vpack.c.b16 %v485, %v484
        %v496 = vpack.c.b16 %v487, %v486
        %v497 = vpack.c.b16 %v489, %v488
        %506 = vmatprep.subr.bf16.mxu0 0
        %507 = vmatpush1.bf16.msra.mxu0 %v490
        %508 = vmatprep.subr.bf16.mxu0 0
        %509 = vmatpush1.bf16.msra.mxu0 %v491
        %510 = vmatprep.subr.bf16.mxu0 0
        %511 = vmatpush1.bf16.msra.mxu0 %v492
        %512 = vmatprep.subr.bf16.mxu0 0
        %513 = vmatpush1.bf16.msra.mxu0 %v493
        %514 = vmatprep.subr.bf16.mxu0 0
        %515 = vmatpush1.bf16.msra.mxu0 %v494
        %516 = vmatprep.subr.bf16.mxu0 0
        %517 = vmatpush1.bf16.msra.mxu0 %v495
        %518 = vmatprep.subr.bf16.mxu0 0
        %519 = vmatpush1.bf16.msra.mxu0 %v496
        %520 = vmatprep.subr.bf16.mxu0 0
        %521 = vmatpush1.bf16.msra.mxu0 %v497
        %522 = vmatprep.subr.bf16.mxu0 0
        %523 = vmatpush1.bf16.msra.mxu0 0
        %524 = vmatprep.subr.bf16.mxu0 0
        %525 = vmatpush1.bf16.msra.mxu0 0
        %526 = vmatprep.subr.bf16.mxu0 0
        %527 = vmatpush1.bf16.msra.mxu0 0
        %528 = vmatprep.subr.bf16.mxu0 0
        %529 = vmatpush1.bf16.msra.mxu0 0
        %530 = vmatprep.subr.bf16.mxu0 0
        %531 = vmatpush1.bf16.msra.mxu0 0
        %532 = vmatprep.subr.bf16.mxu0 0
        %533 = vmatpush1.bf16.msra.mxu0 0
        %534 = vmatprep.subr.bf16.mxu0 0
        %535 = vmatpush1.bf16.msra.mxu0 0
        %536 = vmatprep.subr.bf16.mxu0 0
        %537 = vmatpush1.bf16.msra.mxu0 0
        %538 = vmatprep.mubr.bf16.mxu0 0
        %539 = vmatmul.mubr.bf16.gmra.mrb[0].mxu0 %v435
        %v540 = vpop.f32.mrb[0].mxu0
        %v541 = vadd.f32 %v457, %v540
        %v542 = vpop.f32.mrb[0].mxu0
        %v543 = vpop.f32.mrb[0].mxu0
        %v544 = vpop.f32.mrb[0].mxu0
        %545 = vdwg.mxu0
        %v546 = vmax.f32 %v541, 0.0
        %v547 = vpack.c.bf16 %v546, %v546
        %v548 = vld [vmem:[#allocation4 + $0x1a0] sm:$0xf]
        %v549 = vld [vmem:[#allocation4 + $0x1a8] sm:$0xf]
        %v550 = vld [vmem:[#allocation4 + $0x1b0] sm:$0xf]
        %v551 = vld [vmem:[#allocation4 + $0x1b8] sm:$0xf]
        %v552 = vld [vmem:[#allocation4 + $0x1c0] sm:$0xf]
        %v553 = vld [vmem:[#allocation4 + $0x1c8] sm:$0xf]
        %v554 = vld [vmem:[#allocation4 + $0x1d0] sm:$0xf]
        %v555 = vld [vmem:[#allocation4 + $0x1d8] sm:$0xf]
        %v556 = vld [vmem:[#allocation4 + $0x1e0] sm:$0xf]
        %v557 = vld [vmem:[#allocation4 + $0x1e8] sm:$0xf]
        %v558 = vld [vmem:[#allocation4 + $0x1f0] sm:$0xf]
        %v559 = vld [vmem:[#allocation4 + $0x1f8] sm:$0xf]
        %v560 = vld [vmem:[#allocation4 + $0x200] sm:$0xf]
        %v561 = vld [vmem:[#allocation4 + $0x208] sm:$0xf]
        %v562 = vld [vmem:[#allocation4 + $0x210] sm:$0xf]
        %v563 = vld [vmem:[#allocation4 + $0x218] sm:$0xf]
        %v564 = vlaneseq
        %v565 = vshrl.u32 %v564, 7
        %v566 = vsub.s32 3, %v565
        %v567 = vrot.slane %v453, %v566
        %v584 = vunpack.c.l.b16 %v548
        %v585 = vunpack.c.l.b16 %v549
        %v586 = vunpack.c.l.b16 %v550
        %v587 = vunpack.c.l.b16 %v551
        %v588 = vunpack.c.l.b16 %v552
        %v589 = vunpack.c.l.b16 %v553
        %v590 = vunpack.c.l.b16 %v554
        %v591 = vunpack.c.l.b16 %v555
        %v592 = vunpack.c.l.b16 %v556
        %v593 = vunpack.c.l.b16 %v557
        %v594 = vunpack.c.l.b16 %v558
        %v595 = vunpack.c.l.b16 %v559
        %v596 = vunpack.c.l.b16 %v560
        %v597 = vunpack.c.l.b16 %v561
        %v598 = vunpack.c.l.b16 %v562
        %v599 = vunpack.c.l.b16 %v563
        %v600 = vpack.c.b16 %v585, %v584
        %v601 = vpack.c.b16 %v587, %v586
        %v602 = vpack.c.b16 %v589, %v588
        %v603 = vpack.c.b16 %v591, %v590
        %v604 = vpack.c.b16 %v593, %v592
        %v605 = vpack.c.b16 %v595, %v594
        %v606 = vpack.c.b16 %v597, %v596
        %v607 = vpack.c.b16 %v599, %v598
        %616 = vmatprep.subr.bf16.mxu0 0
        %617 = vmatpush1.bf16.msra.mxu0 %v600
        %618 = vmatprep.subr.bf16.mxu0 0
        %619 = vmatpush1.bf16.msra.mxu0 %v601
        %620 = vmatprep.subr.bf16.mxu0 0
        %621 = vmatpush1.bf16.msra.mxu0 %v602
        %622 = vmatprep.subr.bf16.mxu0 0
        %623 = vmatpush1.bf16.msra.mxu0 %v603
        %624 = vmatprep.subr.bf16.mxu0 0
        %625 = vmatpush1.bf16.msra.mxu0 %v604
        %626 = vmatprep.subr.bf16.mxu0 0
        %627 = vmatpush1.bf16.msra.mxu0 %v605
        %628 = vmatprep.subr.bf16.mxu0 0
        %629 = vmatpush1.bf16.msra.mxu0 %v606
        %630 = vmatprep.subr.bf16.mxu0 0
        %631 = vmatpush1.bf16.msra.mxu0 %v607
        %632 = vmatprep.subr.bf16.mxu0 0
        %633 = vmatpush1.bf16.msra.mxu0 0
        %634 = vmatprep.subr.bf16.mxu0 0
        %635 = vmatpush1.bf16.msra.mxu0 0
        %636 = vmatprep.subr.bf16.mxu0 0
        %637 = vmatpush1.bf16.msra.mxu0 0
        %638 = vmatprep.subr.bf16.mxu0 0
        %639 = vmatpush1.bf16.msra.mxu0 0
        %640 = vmatprep.subr.bf16.mxu0 0
        %641 = vmatpush1.bf16.msra.mxu0 0
        %642 = vmatprep.subr.bf16.mxu0 0
        %643 = vmatpush1.bf16.msra.mxu0 0
        %644 = vmatprep.subr.bf16.mxu0 0
        %645 = vmatpush1.bf16.msra.mxu0 0
        %646 = vmatprep.subr.bf16.mxu0 0
        %647 = vmatpush1.bf16.msra.mxu0 0
        %648 = vmatprep.mubr.bf16.mxu0 0
        %649 = vmatmul.mubr.bf16.gmra.mrb[0].mxu0 %v547
        %v650 = vpop.f32.mrb[0].mxu0
        %v651 = vadd.f32 %v567, %v650
        %v652 = vpop.f32.mrb[0].mxu0
        %v653 = vpop.f32.mrb[0].mxu0
        %v654 = vpop.f32.mrb[0].mxu0
        %655 = vdwg.mxu0
        %vm656 = vcmask 15360
        %657 = vst.msk [vmem:[%s173] sm:$0xff] %vm656, %v651
        %p658 = scmp.lt.s32.totalorder %s17, 1
        %s659 = scalar_select %p658, %s17, 1
        %s660 = smul.addr %s659, 8
        %s661 = scalar_lea.vmem %s2, %s660
        // Predicated region
        $region37: #{tpu_custom_call.1} parent=27 // pred_check
          %p662 = pneg %p82
        $region38: #{tpu_custom_call.1} parent=27 // pred_check_branch
          %664 = sbr.rel (%p662) target = $region40
        $region39: #{tpu_custom_call.1} parent=27 // pred_region
          _
        $region40: #{tpu_custom_call.1} parent=27 // pred_fallthru
          _
      $region28: #{tpu_custom_call.1} parent=5 // pred_fallthru
        _
      %p665 = scmp.le.s32.totalorder 2, %s12
      // Predicated region
      $region41: #{tpu_custom_call.1} parent=5 // pred_check
        %p666 = pneg %p665
      $region42: #{tpu_custom_call.1} parent=5 // pred_check_branch
        %668 = sbr.rel (%p666) target = $region44
      $region43: #{tpu_custom_call.1} parent=5 // pred_region
        %s669 = ssub.s32 %s12, 2
        // Predicated region
        $region45: #{tpu_custom_call.1} parent=43 // pred_check
          %p670 = pneg %p88
        $region46: #{tpu_custom_call.1} parent=43 // pred_check_branch
          %672 = sbr.rel (%p670) target = $region48
        $region47: #{tpu_custom_call.1} parent=43 // pred_region
          %p673 = scmp.lt.s32.totalorder %s18, 1
          %s674 = scalar_select %p673, %s18, 1
          %s675 = smul.addr %s674, 8
          %s676 = scalar_lea.vmem %s2, %s675
        $region48: #{tpu_custom_call.1} parent=43 // pred_fallthru
          _
      $region44: #{tpu_custom_call.1} parent=5 // pred_fallthru
        _
    $region6: #{tpu_custom_call.1} parent=1 // loop_footer
      %s16 = sadd.s32 1, %s12
    $region7: #{tpu_custom_call.1} parent=1 // loop_footer_branch
      %11 = sbr.rel target = $region3
    $region8: #{tpu_custom_call.1} parent=1 // loop_exit
      _
    %677 = vsyncpa [#allocation3], 1
    %s678 = scalar_lea.sflag [#allocation3], 1
    %679 = vsyncpa %s678, 1
    %680 = vsyncpa [#allocation5], 1

</llo_original>
